<compile_context>
chip_gen: v6e
topology: v6e:2x2x1
jax: 0.10.0
libtpu: 0.0.40
codegen_flags: <defaults>
</compile_context>

<pallas_src>
import functools

import jax
import jax.numpy as jnp
from jax.experimental import pallas as pl
from jax.experimental.pallas import tpu as pltpu

NEG_SLOPE = 0.01       # nn.LeakyReLU() default negative_slope
SUBLANE = 8

# Memory-space enum (small shim for version skew in the enum's name).
_MEMSPACE = getattr(pltpu, "MemorySpace", None) or getattr(pltpu, "TPUMemorySpace")
_VMEM_SPACE = _MEMSPACE.VMEM


def _round_up(n, m):
    return ((n + m - 1) // m) * m


def _device_kind():
    try:
        return jax.devices()[0].device_kind.lower()
    except Exception:
        return ""


def _default_epilogue_dtype():
    # v5e VPU/EUP have no bf16 -> keep the elementwise epilogue in f32 there.
    # v6e/v7x have bf16 VALUs -> bf16 epilogue halves VALU work / vreg pressure.
    return jnp.float32 if "v5" in _device_kind() else jnp.bfloat16


def _physical_vmem_bytes():
    kind = _device_kind()
    if "v5" in kind or "v6" in kind:
        return 128 << 20
    return 64 << 20          # conservative fallback (v7x: 64 MiB per TensorCore)


def _vmem_limit_bytes(needed):
    cap = _physical_vmem_bytes() - (16 << 20)      # headroom for Mosaic scratch
    want = int(needed * 1.5) + (4 << 20)
    return int(max(16 << 20, min(want, cap)))


def _make_mlp_kernel(num_layers, epilogue_dtype):
    """Fused kernel for a fixed number of (Linear, LeakyReLU) layers."""

    def kernel(*refs):
        # refs = (x_ref, w0, b0, w1, b1, ..., out_ref)
        x_ref = refs[0]
        out_ref = refs[-1]
        wb = refs[1:-1]

        h = x_ref[...]                                 # [tm, D0] bf16
        for l in range(num_layers):                    # statically unrolled
            w = wb[2 * l][...]                         # [Din, Dout] bf16 (VMEM-resident)
            b = wb[2 * l + 1][...]                     # [1,   Dout] epilogue dtype
            # MXU: bf16 x bf16 -> f32 accumulation, then bias + LeakyReLU on
            # the VPU in the chip-appropriate epilogue dtype.
            acc = jnp.dot(h.astype(jnp.bfloat16), w,
                          preferred_element_type=jnp.float32)
            y = acc.astype(epilogue_dtype) + b
            h = jnp.where(y >= 0, y, NEG_SLOPE * y)
        out_ref[...] = h.astype(out_ref.dtype)

    return kernel


def prepare_mlp_params(params, epilogue_dtype=None):
    """One-time (outside the jitted forward) cast of nn.Linear params.

    params: list of (w [Din, Dout] f32, b [Dout] f32).
    Returns a flat tuple (w0_bf16, b0, w1_bf16, b1, ...).
    """
    if epilogue_dtype is None:
        epilogue_dtype = _default_epilogue_dtype()
    flat = []
    for w, b in params:
        flat.append(jnp.asarray(w, jnp.bfloat16))
        flat.append(jnp.asarray(b, epilogue_dtype).reshape(1, -1))
    return tuple(flat)


@functools.partial(jax.jit, static_argnames=("tm",))
def mlp_forward(x, flat_wb, *, tm=256):
    """Fused MLP forward.

    x:       [B, D0] float32
    flat_wb: tuple from prepare_mlp_params.
    Returns  [B, D_last] float32 == leaky_relu(...(leaky_relu(x @ w0 + b0))...).
    """
    B, D0 = x.shape
    num_layers = len(flat_wb) // 2
    dims = [D0] + [flat_wb[2 * l].shape[1] for l in range(num_layers)]
    assert flat_wb[0].shape[0] == D0, "input dim mismatch with first weight"
    epilogue_dtype = flat_wb[1].dtype

    # Batch tiling: tm rows per grid step (megacore-parallel axis).
    tm_eff = min(tm, _round_up(B, SUBLANE))
    grid_m = pl.cdiv(B, tm_eff)
    Bp = grid_m * tm_eff

    # Stream x as bf16 (halves input DMA); only pad the batch when needed.
    xb = x.astype(jnp.bfloat16)
    if Bp != B:
        xb = jnp.pad(xb, ((0, Bp - B), (0, 0)))

    # x / out are tiled over the batch grid (auto double-buffered); the
    # weights & biases are whole-array, single-buffered VMEM residents.
    in_specs = [pl.BlockSpec((tm_eff, D0), lambda i: (i, 0))]
    for _ in range(2 * num_layers):
        in_specs.append(pl.BlockSpec(memory_space=_VMEM_SPACE))
    out_specs = pl.BlockSpec((tm_eff, dims[-1]), lambda i: (i, 0))

    # VMEM footprint: weights x1 + double-buffered x/out tiles + activation slack.
    weight_bytes = sum(int(a.size) * a.dtype.itemsize for a in flat_wb)
    tile_bytes = 2 * tm_eff * D0 * 2 + 2 * tm_eff * dims[-1] * 4
    act_bytes = 4 * tm_eff * max(dims) * 4
    vmem_limit = _vmem_limit_bytes(weight_bytes + tile_bytes + act_bytes)

    flops = 2 * Bp * sum(dims[l] * dims[l + 1] for l in range(num_layers))
    bytes_accessed = Bp * D0 * 2 + weight_bytes + Bp * dims[-1] * 4

    out = pl.pallas_call(
        _make_mlp_kernel(num_layers, epilogue_dtype),
        out_shape=jax.ShapeDtypeStruct((Bp, dims[-1]), jnp.float32),
        grid_spec=pl.GridSpec(
            grid=(grid_m,),
            in_specs=in_specs,
            out_specs=out_specs,
        ),
        compiler_params=pltpu.CompilerParams(
            dimension_semantics=("parallel",),
            vmem_limit_bytes=vmem_limit,
        ),
        cost_estimate=pl.CostEstimate(
            flops=flops, transcendentals=0, bytes_accessed=bytes_accessed),
    )(xb, *flat_wb)

    return out[:B, :]


def init_mlp_params(key, layer_sizes):
    """nn.Linear-style init (uniform +-1/sqrt(fan_in)); weights stored [in, out]."""
    params = []
    for i in range(len(layer_sizes) - 1):
        fan_in, fan_out = layer_sizes[i], layer_sizes[i + 1]
        key, kw, kb = jax.random.split(key, 3)
        bound = 1.0 / jnp.sqrt(fan_in)
        w = jax.random.uniform(kw, (fan_in, fan_out), jnp.float32, -bound, bound)
        b = jax.random.uniform(kb, (fan_out,), jnp.float32, -bound, bound)
        params.append((w, b))
    return params


def mlp_reference(x, params):
    h = x
    for w, b in params:
        y = h @ w + b
        h = jnp.where(y >= 0, y, NEG_SLOPE * y)
    return h


if __name__ == "__main__":
    key = jax.random.PRNGKey(0)
    layer_sizes = [32, 64, 16]

    key, kx, kp = jax.random.split(key, 3)
    params = init_mlp_params(kp, layer_sizes)
    # One-time preparation (bf16 cast / bias reshape) OUTSIDE the jitted path.
    flat_wb = prepare_mlp_params(params)

    # Small case (single batch tile).
    batch = 8
    x = jax.random.normal(kx, (batch, layer_sizes[0]), jnp.float32)
    out = jax.block_until_ready(mlp_forward(x, flat_wb))
    ref = mlp_reference(x, params)
    assert out.shape == (batch, layer_sizes[-1])
    # bf16 inputs/weights (+ bf16 epilogue on v6e/v7x) with f32 MXU accumulation
    # -> loosened tolerance vs the f32 reference.
    assert jnp.allclose(out, ref, atol=5e-2, rtol=5e-2), float(
        jnp.max(jnp.abs(out - ref)))

    # Larger, non-divisible batch to exercise the batch grid + padding path.
    key, kx2 = jax.random.split(key)
    x2 = jax.random.normal(kx2, (300, layer_sizes[0]), jnp.float32)
    out2 = jax.block_until_ready(mlp_forward(x2, flat_wb))
    ref2 = mlp_reference(x2, params)
    assert out2.shape == (300, layer_sizes[-1])
    assert jnp.allclose(out2, ref2, atol=5e-2, rtol=5e-2), float(
        jnp.max(jnp.abs(out2 - ref2)))

    print("KERNEL_OK")
</pallas_src>

<mosaic_0001>
module attributes {stable_mosaic.version = 11 : i64} {
  func.func @kernel(%arg0: i32, %arg1: memref<8x32xbf16, #tpu.memory_space<vmem>>, %arg2: memref<32x64xbf16, #tpu.memory_space<vmem>>, %arg3: memref<1x64xbf16, #tpu.memory_space<vmem>>, %arg4: memref<64x16xbf16, #tpu.memory_space<vmem>>, %arg5: memref<1x16xbf16, #tpu.memory_space<vmem>>, %arg6: memref<8x16xf32, #tpu.memory_space<vmem>>) attributes {dimension_semantics = [#tpu.dimension_semantics<parallel>], iteration_bounds = array<i64: 1>, scalar_prefetch = 0 : i64, scratch_operands = 0 : i64, tpu.core_type = #tpu.core_type<tc>, window_params = [{transform_indices = @transform_0, window_bounds = array<i64: 8, 32>}, {pipeline_mode = #tpu.pipeline_mode<synchronous>, transform_indices = @transform_1, window_bounds = array<i64: 32, 64>}, {pipeline_mode = #tpu.pipeline_mode<synchronous>, transform_indices = @transform_2, window_bounds = array<i64: 1, 64>}, {pipeline_mode = #tpu.pipeline_mode<synchronous>, transform_indices = @transform_3, window_bounds = array<i64: 64, 16>}, {pipeline_mode = #tpu.pipeline_mode<synchronous>, transform_indices = @transform_4, window_bounds = array<i64: 1, 16>}, {transform_indices = @transform_5, window_bounds = array<i64: 8, 16>}]} {
    %c0 = arith.constant 0 : index
    %c0_0 = arith.constant 0 : index
    %0 = vector.load %arg1[%c0, %c0_0] : memref<8x32xbf16, #tpu.memory_space<vmem>>, vector<8x32xbf16>
    %c0_1 = arith.constant 0 : index
    %c0_2 = arith.constant 0 : index
    %1 = vector.load %arg2[%c0_1, %c0_2] : memref<32x64xbf16, #tpu.memory_space<vmem>>, vector<32x64xbf16>
    %c0_3 = arith.constant 0 : index
    %c0_4 = arith.constant 0 : index
    %2 = vector.load %arg3[%c0_3, %c0_4] : memref<1x64xbf16, #tpu.memory_space<vmem>>, vector<1x64xbf16>
    %cst = arith.constant dense<0.000000e+00> : vector<8x64xf32>
    %3 = tpu.matmul %0, %1, %cst {dimension_numbers = #tpu.dot_dimension_numbers<[1], [0], [0], [1], [0, 0, 1, 1], [], []>} : vector<8x32xbf16>, vector<32x64xbf16>, vector<8x64xf32> -> vector<8x64xf32>
    %4 = arith.truncf %3 : vector<8x64xf32> to vector<8x64xbf16>
    %5 = vector.broadcast %2 : vector<1x64xbf16> to vector<8x64xbf16>
    %6 = arith.addf %4, %5 : vector<8x64xbf16>
    %cst_5 = arith.constant 0.000000e+00 : bf16
    %7 = vector.broadcast %cst_5 : bf16 to vector<8x64xbf16>
    %8 = arith.cmpf oge, %6, %7 : vector<8x64xbf16>
    %cst_6 = arith.constant 1.000980e-02 : bf16
    %9 = vector.broadcast %cst_6 : bf16 to vector<8x64xbf16>
    %10 = arith.mulf %9, %6 : vector<8x64xbf16>
    %11 = arith.select %8, %6, %10 : vector<8x64xi1>, vector<8x64xbf16>
    %c0_7 = arith.constant 0 : index
    %c0_8 = arith.constant 0 : index
    %12 = vector.load %arg4[%c0_7, %c0_8] : memref<64x16xbf16, #tpu.memory_space<vmem>>, vector<64x16xbf16>
    %c0_9 = arith.constant 0 : index
    %c0_10 = arith.constant 0 : index
    %13 = vector.load %arg5[%c0_9, %c0_10] : memref<1x16xbf16, #tpu.memory_space<vmem>>, vector<1x16xbf16>
    %cst_11 = arith.constant dense<0.000000e+00> : vector<8x16xf32>
    %14 = tpu.matmul %11, %12, %cst_11 {dimension_numbers = #tpu.dot_dimension_numbers<[1], [0], [0], [1], [0, 0, 1, 1], [], []>} : vector<8x64xbf16>, vector<64x16xbf16>, vector<8x16xf32> -> vector<8x16xf32>
    %15 = arith.truncf %14 : vector<8x16xf32> to vector<8x16xbf16>
    %16 = vector.broadcast %13 : vector<1x16xbf16> to vector<8x16xbf16>
    %17 = arith.addf %15, %16 : vector<8x16xbf16>
    %cst_12 = arith.constant 0.000000e+00 : bf16
    %18 = vector.broadcast %cst_12 : bf16 to vector<8x16xbf16>
    %19 = arith.cmpf oge, %17, %18 : vector<8x16xbf16>
    %cst_13 = arith.constant 1.000980e-02 : bf16
    %20 = vector.broadcast %cst_13 : bf16 to vector<8x16xbf16>
    %21 = arith.mulf %20, %17 : vector<8x16xbf16>
    %22 = arith.select %19, %17, %21 : vector<8x16xi1>, vector<8x16xbf16>
    %23 = arith.extf %22 : vector<8x16xbf16> to vector<8x16xf32>
    %c0_14 = arith.constant 0 : index
    %c0_15 = arith.constant 0 : index
    %24 = vector.load %arg6[%c0_14, %c0_15] : memref<8x16xf32, #tpu.memory_space<vmem>>, vector<8x16xf32>
    tpu.vector_store %arg6[%c0_14, %c0_15], %23 {strides = array<i32>} : memref<8x16xf32, #tpu.memory_space<vmem>>, vector<8x16xf32>,
    return
  }
  func.func @transform_0(%arg0: i32) -> (i32, i32) {
    %c0_i32 = arith.constant 0 : i32
    %c0_i32_0 = arith.constant 0 : i32
    return %arg0, %c0_i32 : i32, i32
  }
  func.func @transform_1(%arg0: i32) -> (i32, i32) {
    %c0_i32 = arith.constant 0 : i32
    %c0_i32_0 = arith.constant 0 : i32
    %c0_i32_1 = arith.constant 0 : i32
    return %c0_i32, %c0_i32_0 : i32, i32
  }
  func.func @transform_2(%arg0: i32) -> (i32, i32) {
    %c0_i32 = arith.constant 0 : i32
    %c0_i32_0 = arith.constant 0 : i32
    %c0_i32_1 = arith.constant 0 : i32
    return %c0_i32, %c0_i32_0 : i32, i32
  }
  func.func @transform_3(%arg0: i32) -> (i32, i32) {
    %c0_i32 = arith.constant 0 : i32
    %c0_i32_0 = arith.constant 0 : i32
    %c0_i32_1 = arith.constant 0 : i32
    return %c0_i32, %c0_i32_0 : i32, i32
  }
  func.func @transform_4(%arg0: i32) -> (i32, i32) {
    %c0_i32 = arith.constant 0 : i32
    %c0_i32_0 = arith.constant 0 : i32
    %c0_i32_1 = arith.constant 0 : i32
    return %c0_i32, %c0_i32_0 : i32, i32
  }
  func.func @transform_5(%arg0: i32) -> (i32, i32) {
    %c0_i32 = arith.constant 0 : i32
    %c0_i32_0 = arith.constant 0 : i32
    return %arg0, %c0_i32 : i32, i32
  }
}

</mosaic_0001>

<llo_original>
// kernel: mlp_forward.1
$region0: #{mlp_forward.1}
  #allocation0 [shape = 'u32[]', space=smem, size = 0x4, offset = 0x4, fixed_abs, tag = 'smem constant byte address 0x4 - core index']
  #allocation1 [shape = 'u32[144,128]{1,0:T(1,128)}', space=vmem, size = 0x12000, scoped, tag = 'internal scratch']
  %s0 = inlined_call_operand.vmem [shape: bf16[8,32], index: 0, kind: input, shape index: {}]
  %s1 = inlined_call_operand.vmem [shape: bf16[32,64], index: 1, kind: input, shape index: {}]
  %s2 = inlined_call_operand.vmem [shape: bf16[1,64], index: 2, kind: input, shape index: {}]
  %s3 = inlined_call_operand.vmem [shape: bf16[64,16], index: 3, kind: input, shape index: {}]
  %s4 = inlined_call_operand.vmem [shape: bf16[1,16], index: 4, kind: input, shape index: {}]
  %s5 = inlined_call_operand.hbm [shape: f32[8,16], index: 5, kind: output, shape index: {}]
  %s6 = sld [smem:[#allocation0]]
  $region30: #{mlp_forward.1} parent=0
    _
  %s8 = ssub.s32 1, %s6
  %s9 = scalar_select 0, %s8, %s6
  $region1: #{mlp_forward.1} parent=0
    #allocation2 [shape = 'u8[4096]{0}', space=vmem, size = 0x1000, scoped, tag = 'output window, operand 0, single buffered']
    #allocation3 [shape = 's32[1]{0}', space=sflag, size = 0x4, scoped, tag = 'scoped memory for mlp_forward.1']
    %10 = vsyncpa [#allocation3], 0
    // Predicated region
    $region2: #{mlp_forward.1} parent=1 // pred_check
      _
    $region3: #{mlp_forward.1} parent=1 // pred_check_branch
      %12 = sbr.rel (0) target = $region5
    $region4: #{mlp_forward.1} parent=1 // pred_region
      _
    $region5: #{mlp_forward.1} parent=1 // pred_fallthru
      _
    // Predicated region
    $region6: #{mlp_forward.1} parent=1 // pred_check
      _
    $region7: #{mlp_forward.1} parent=1 // pred_check_branch
      %14 = sbr.rel (0) target = $region9
    $region8: #{mlp_forward.1} parent=1 // pred_region
      _
    $region9: #{mlp_forward.1} parent=1 // pred_fallthru
      _
    // Predicated region
    $region10: #{mlp_forward.1} parent=1 // pred_check
      _
    $region11: #{mlp_forward.1} parent=1 // pred_check_branch
      %16 = sbr.rel (0) target = $region13
    $region12: #{mlp_forward.1} parent=1 // pred_region
      _
    $region13: #{mlp_forward.1} parent=1 // pred_fallthru
      _
    // Predicated region
    $region14: #{mlp_forward.1} parent=1 // pred_check
      _
    $region15: #{mlp_forward.1} parent=1 // pred_check_branch
      %18 = sbr.rel (0) target = $region17
    $region16: #{mlp_forward.1} parent=1 // pred_region
      _
    $region17: #{mlp_forward.1} parent=1 // pred_fallthru
      _
    // Predicated region
    $region18: #{mlp_forward.1} parent=1 // pred_check
      _
    $region19: #{mlp_forward.1} parent=1 // pred_check_branch
      %20 = sbr.rel (0) target = $region21
    $region20: #{mlp_forward.1} parent=1 // pred_region
      _
    $region21: #{mlp_forward.1} parent=1 // pred_fallthru
      _
    %v23 = vld [vmem:[%s0] sm:$0xf]
    %v24 = vld [vmem:[%s1] sm:$0xf]
    %v25 = vld [vmem:[%s1 + $0x4] sm:$0xf]
    %v26 = vld [vmem:[%s1 + $0x8] sm:$0xf]
    %v27 = vld [vmem:[%s1 + $0xc] sm:$0xf]
    %v28 = vld [vmem:[%s2] sm:$0x1]
    %v33 = vunpack.c.l.b16 %v24
    %v34 = vunpack.c.l.b16 %v25
    %v35 = vunpack.c.l.b16 %v26
    %v36 = vunpack.c.l.b16 %v27
    %v37 = vpack.c.b16 %v34, %v33
    %v38 = vpack.c.b16 %v36, %v35
    %vm41 = vcmask 261120
    %v43 = vsel %vm41, %v23, 0
    %45 = vmatprep.subr.bf16.mxu0 0
    %46 = vmatpush1.bf16.msra.mxu0 0
    %47 = vmatprep.subr.bf16.mxu0 0
    %48 = vmatpush1.bf16.msra.mxu0 0
    %49 = vmatprep.subr.bf16.mxu0 0
    %50 = vmatpush1.bf16.msra.mxu0 0
    %51 = vmatprep.subr.bf16.mxu0 0
    %52 = vmatpush1.bf16.msra.mxu0 0
    %53 = vmatprep.subr.bf16.mxu0 0
    %54 = vmatpush1.bf16.msra.mxu0 0
    %55 = vmatprep.subr.bf16.mxu0 0
    %56 = vmatpush1.bf16.msra.mxu0 0
    %57 = vmatprep.subr.bf16.mxu0 0
    %58 = vmatpush1.bf16.msra.mxu0 %v38
    %59 = vmatprep.subr.bf16.mxu0 0
    %60 = vmatpush1.bf16.msra.mxu0 %v37
    %61 = vmatprep.subr.bf16.mxu0 0
    %62 = vmatpush2.bf16.msra.mxu0 0
    %63 = vmatprep.subr.bf16.mxu0 0
    %64 = vmatpush2.bf16.msra.mxu0 0
    %65 = vmatprep.subr.bf16.mxu0 0
    %66 = vmatpush2.bf16.msra.mxu0 0
    %67 = vmatprep.subr.bf16.mxu0 0
    %68 = vmatpush2.bf16.msra.mxu0 0
    %69 = vmatprep.subr.bf16.mxu0 0
    %70 = vmatpush2.bf16.msra.mxu0 0
    %71 = vmatprep.subr.bf16.mxu0 0
    %72 = vmatpush2.bf16.msra.mxu0 0
    %73 = vmatprep.subr.bf16.mxu0 0
    %74 = vmatpush2.bf16.msra.mxu0 0
    %75 = vmatprep.subr.bf16.mxu0 0
    %76 = vmatpush2.bf16.msra.mxu0 0
    %77 = vmatprep.mubr.bf16.mxu0 0
    %78 = vmatmul.mubr.bf16.gmra.mxu0 %v43
    %v79 = vpop.f32.mrf.mxu0
    %v80 = vadd.f32 0.0, %v79
    %v81 = vpop.f32.mrf.mxu0
    %v82 = vpop.f32.mrf.mxu0
    %v83 = vpop.f32.mrf.mxu0
    %84 = vdwg.mxu0
    %v85 = vpack.c.bf16 %v80, %v80
    %v87 = vpack.i.b16 %v28, %v28
    %v89 = vlaneseq
    %v90 = vshrl.u32 %v89, 7
    %v91 = vsub.s32 0, %v90
    %v92 = vrot.slane %v87, %v91
    %v93 = vadd.bf16 %v85, %v92
    %vm94 = vcmp.ge.bf16.partialorder %v93, 0
    %v95 = vmul.bf16 %v93, 1009007652
    %v96 = vsel %vm94, %v93, %v95
    %v97 = vld [vmem:[%s3] sm:$0xf]
    %v98 = vld [vmem:[%s3 + $0x4] sm:$0xf]
    %v99 = vld [vmem:[%s3 + $0x8] sm:$0xf]
    %v100 = vld [vmem:[%s3 + $0xc] sm:$0xf]
    %v101 = vld [vmem:[%s3 + $0x10] sm:$0xf]
    %v102 = vld [vmem:[%s3 + $0x14] sm:$0xf]
    %v103 = vld [vmem:[%s3 + $0x18] sm:$0xf]
    %v104 = vld [vmem:[%s3 + $0x1c] sm:$0xf]
    %v105 = vld [vmem:[%s4] sm:$0x1]
    %v114 = vunpack.c.l.b16 %v97
    %v115 = vunpack.c.l.b16 %v98
    %v116 = vunpack.c.l.b16 %v99
    %v117 = vunpack.c.l.b16 %v100
    %v118 = vunpack.c.l.b16 %v101
    %v119 = vunpack.c.l.b16 %v102
    %v120 = vunpack.c.l.b16 %v103
    %v121 = vunpack.c.l.b16 %v104
    %v122 = vpack.c.b16 %v115, %v114
    %v123 = vpack.c.b16 %v117, %v116
    %v124 = vpack.c.b16 %v119, %v118
    %v125 = vpack.c.b16 %v121, %v120
    %vm130 = vcmask 523264
    %v132 = vsel %vm130, %v96, 0
    %134 = vmatprep.subr.bf16.mxu0 0
    %135 = vmatpush1.bf16.msra.mxu0 0
    %136 = vmatprep.subr.bf16.mxu0 0
    %137 = vmatpush1.bf16.msra.mxu0 0
    %138 = vmatprep.subr.bf16.mxu0 0
    %139 = vmatpush1.bf16.msra.mxu0 0
    %140 = vmatprep.subr.bf16.mxu0 0
    %141 = vmatpush1.bf16.msra.mxu0 0
    %142 = vmatprep.subr.bf16.mxu0 0
    %143 = vmatpush1.bf16.msra.mxu0 %v125
    %144 = vmatprep.subr.bf16.mxu0 0
    %145 = vmatpush1.bf16.msra.mxu0 %v124
    %146 = vmatprep.subr.bf16.mxu0 0
    %147 = vmatpush1.bf16.msra.mxu0 %v123
    %148 = vmatprep.subr.bf16.mxu0 0
    %149 = vmatpush1.bf16.msra.mxu0 %v122
    %150 = vmatprep.subr.bf16.mxu0 0
    %151 = vmatpush2.bf16.msra.mxu0 0
    %152 = vmatprep.subr.bf16.mxu0 0
    %153 = vmatpush2.bf16.msra.mxu0 0
    %154 = vmatprep.subr.bf16.mxu0 0
    %155 = vmatpush2.bf16.msra.mxu0 0
    %156 = vmatprep.subr.bf16.mxu0 0
    %157 = vmatpush2.bf16.msra.mxu0 0
    %158 = vmatprep.subr.bf16.mxu0 0
    %159 = vmatpush2.bf16.msra.mxu0 0
    %160 = vmatprep.subr.bf16.mxu0 0
    %161 = vmatpush2.bf16.msra.mxu0 0
    %162 = vmatprep.subr.bf16.mxu0 0
    %163 = vmatpush2.bf16.msra.mxu0 0
    %164 = vmatprep.subr.bf16.mxu0 0
    %165 = vmatpush2.bf16.msra.mxu0 0
    %166 = vmatprep.mubr.bf16.mxu0 0
    %167 = vmatmul.mubr.bf16.gmra.mxu0 %v132
    %v168 = vpop.f32.mrf.mxu0
    %v169 = vadd.f32 0.0, %v168
    %v170 = vpop.f32.mrf.mxu0
    %v171 = vpop.f32.mrf.mxu0
    %v172 = vpop.f32.mrf.mxu0
    %173 = vdwg.mxu0
    %v174 = vpack.c.bf16 %v169, %v169
    %v176 = vpack.i.b16 %v105, %v105
    %v178 = vlaneseq
    %v179 = vshrl.u32 %v178, 7
    %v180 = vsub.s32 0, %v179
    %v181 = vrot.slane %v176, %v180
    %v182 = vadd.bf16 %v174, %v181
    %vm183 = vcmp.ge.bf16.partialorder %v182, 0
    %v184 = vmul.bf16 %v182, 1009007652
    %v185 = vsel %vm183, %v182, %v184
    %v186 = vunpack.c.l.bf16 %v185
    %vm187 = vcmask 130048
    %188 = vst.msk [vmem:[#allocation2] sm:$0xff] %vm187, %v186
    // Predicated region
    $region22: #{mlp_forward.1} parent=1 // pred_check
      _
    $region23: #{mlp_forward.1} parent=1 // pred_check_branch
      %190 = sbr.rel (0) target = $region25
    $region24: #{mlp_forward.1} parent=1 // pred_region
      %s192 = ssub.s32 128, 128
      %193 = vsyncadd [#allocation3], %s192
      %s195 = sshll.u32 [#allocation2], 4
      %s196 = int_to_ptr.vmem [resolvable:$true] %s195
      %198 = dma.vmem_to_hbm [thread:$0]  %s196, 128, %s5, [#allocation3]
    $region25: #{mlp_forward.1} parent=1 // pred_fallthru
      _
    // Predicated region
    $region26: #{mlp_forward.1} parent=1 // pred_check
      _
    $region27: #{mlp_forward.1} parent=1 // pred_check_branch
      %200 = sbr.rel (0) target = $region29
    $region28: #{mlp_forward.1} parent=1 // pred_region
      %201 = dma.done [#allocation3], 128
    $region29: #{mlp_forward.1} parent=1 // pred_fallthru
      _
    %202 = vsyncpa [#allocation3], 1

</llo_original>
